<compile_context>
chip_gen: v6e
topology: v6e:2x2x1
jax: 0.10.0
libtpu: 0.0.40
codegen_flags: <defaults>
</compile_context>

<pallas_src>
import jax
import jax.numpy as jnp
from jax.experimental import pallas as pl
from jax.experimental.pallas import tpu as pltpu


_SUBLANE = 16        # bf16 matmul operands -> 16-row sublane granularity
_MAX_TILE_B = 1024   # overhead-bound workload: few grid steps, big tiles


def actor_kernel(x_ref, w1_ref, b1_ref, w2_ref, b2_ref,
                 w3_ref, b3_ref, w4_ref, b4_ref, o_ref):
    # Four MXU matmuls (bf16 inputs, f32 accumulation) + VPU ReLU + EUP tanh,
    # all on the current batch tile.
    x = x_ref[...].astype(jnp.bfloat16)
    h = jnp.dot(x, w1_ref[...],
                preferred_element_type=jnp.float32) + b1_ref[...]
    h = jnp.maximum(h, 0.0)
    h = jnp.dot(h.astype(jnp.bfloat16), w2_ref[...],
                preferred_element_type=jnp.float32) + b2_ref[...]
    h = jnp.maximum(h, 0.0)
    h = jnp.dot(h.astype(jnp.bfloat16), w3_ref[...],
                preferred_element_type=jnp.float32) + b3_ref[...]
    h = jnp.maximum(h, 0.0)
    y = jnp.dot(h.astype(jnp.bfloat16), w4_ref[...],
                preferred_element_type=jnp.float32) + b4_ref[...]
    o_ref[...] = jnp.tanh(y).astype(o_ref.dtype)


def _round_up(x, m):
    return ((x + m - 1) // m) * m


def _cdiv(a, b):
    return -(-a // b)


def _choose_tile(batch, *, max_tile=_MAX_TILE_B, sublane=_SUBLANE):
    """Pick a batch tile: as few grid steps as possible (<= max_tile rows per
    step), padding bounded by the sublane round-up, and an even step count
    whenever the batch is large enough to feed both v7x TensorCores."""
    batch = max(batch, 1)
    n_steps = _cdiv(batch, max_tile)
    if n_steps % 2 == 1 and batch >= 2 * sublane:
        n_steps += 1
    return _round_up(_cdiv(batch, n_steps), sublane)


def actor_forward(x, params, *, tile_b=None):
    """Run the actor MLP on x of shape (batch, observation_space)."""
    (w1, b1), (w2, b2), (w3, b3), (w4, b4) = params
    batch, obs = x.shape
    action_space = w4.shape[1]

    # --- Exact zero-padding for lane-dense intermediates -------------------
    # fc1: pad 64 -> 128 output columns (zero cols in W1/b1, zero rows in W2).
    h1 = w1.shape[1]
    h1p = _round_up(h1, 128)
    if h1p != h1:
        w1 = jnp.pad(w1, ((0, 0), (0, h1p - h1)))
        b1 = jnp.pad(b1, ((0, 0), (0, h1p - h1)))
        w2 = jnp.pad(w2, ((0, h1p - h1), (0, 0)))
    h2, h3 = w2.shape[1], w3.shape[1]
    # fc4: pad action dim up to a multiple of 128 (unmasked lane-dense stores).
    n4p = _round_up(action_space, 128)
    if n4p != action_space:
        w4 = jnp.pad(w4, ((0, 0), (0, n4p - action_space)))
        b4 = jnp.pad(b4, ((0, 0), (0, n4p - action_space)))

    # --- bf16 matmul operands (accumulation stays f32 inside the kernel) ---
    w1b, w2b, w3b, w4b = (w.astype(jnp.bfloat16) for w in (w1, w2, w3, w4))

    # --- Batch tiling -------------------------------------------------------
    if tile_b is None:
        tile_b = _choose_tile(batch)
    tile_b = _round_up(max(int(tile_b), _SUBLANE), _SUBLANE)
    b_pad = _round_up(max(batch, 1), tile_b)
    xp = jnp.pad(x, ((0, b_pad - batch), (0, 0))) if b_pad != batch else x
    grid = (b_pad // tile_b,)

    def resident(arr):
        # Whole-array block, constant block index: DMA'd once, VMEM-resident.
        return pl.BlockSpec(arr.shape, lambda i: (0, 0))

    flops = 2 * b_pad * (obs * h1p + h1p * h2 + h2 * h3 + h3 * n4p)
    bytes_accessed = (
        int(xp.size) * 4 + b_pad * n4p * 4
        + sum(int(w.size) * 2 for w in (w1b, w2b, w3b, w4b))
        + sum(int(b.size) * 4 for b in (b1, b2, b3, b4))
    )

    out = pl.pallas_call(
        actor_kernel,
        out_shape=jax.ShapeDtypeStruct((b_pad, n4p), jnp.float32),
        grid_spec=pltpu.PrefetchScalarGridSpec(
            num_scalar_prefetch=0,
            grid=grid,
            in_specs=[
                pl.BlockSpec((tile_b, obs), lambda i: (i, 0)),  # x tile
                resident(w1b), resident(b1),
                resident(w2b), resident(b2),
                resident(w3b), resident(b3),
                resident(w4b), resident(b4),
            ],
            out_specs=pl.BlockSpec((tile_b, n4p), lambda i: (i, 0)),
        ),
        compiler_params=pltpu.CompilerParams(
            dimension_semantics=("parallel",),   # shard batch grid over TCs (v7x)
            vmem_limit_bytes=32 * 1024 * 1024,
        ),
        cost_estimate=pl.CostEstimate(
            flops=flops,
            transcendentals=b_pad * n4p,
            bytes_accessed=bytes_accessed,
        ),
    )(xp, w1b, b1, w2b, b2, w3b, b3, w4b, b4)

    return out[:batch, :action_space]


def init_linear(key, fan_in, fan_out):
    # Deterministic init mimicking PyTorch's default Linear init
    # (uniform in [-1/sqrt(fan_in), 1/sqrt(fan_in)] for both W and b).
    kw, kb = jax.random.split(key)
    bound = 1.0 / jnp.sqrt(jnp.float32(fan_in))
    w = jax.random.uniform(kw, (fan_in, fan_out), jnp.float32, -bound, bound)
    b = jax.random.uniform(kb, (1, fan_out), jnp.float32, -bound, bound)
    return w, b


def init_actor_params(key, observation_space, action_space):
    k1, k2, k3, k4 = jax.random.split(key, 4)
    return (
        init_linear(k1, observation_space, 64),
        init_linear(k2, 64, 128),
        init_linear(k3, 128, 256),
        init_linear(k4, 256, action_space),
    )


def _reference_f32(x, params):
    (w1, b1), (w2, b2), (w3, b3), (w4, b4) = params
    h = jnp.maximum(x @ w1 + b1, 0.0)
    h = jnp.maximum(h @ w2 + b2, 0.0)
    h = jnp.maximum(h @ w3 + b3, 0.0)
    return jnp.tanh(h @ w4 + b4)


def _reference_bf16(x, params):
    # Mirrors the kernel's dtype policy: bf16 matmul operands, f32 accumulation
    # and f32 bias/ReLU/tanh.
    def lin(h, w, b):
        return jnp.dot(h.astype(jnp.bfloat16), w.astype(jnp.bfloat16),
                       preferred_element_type=jnp.float32) + b
    (w1, b1), (w2, b2), (w3, b3), (w4, b4) = params
    h = jnp.maximum(lin(x, w1, b1), 0.0)
    h = jnp.maximum(lin(h, w2, b2), 0.0)
    h = jnp.maximum(lin(h, w3, b3), 0.0)
    return jnp.tanh(lin(h, w4, b4))


if __name__ == "__main__":
    observation_space = 16
    action_space = 8

    key = jax.random.PRNGKey(0)
    pkey, xkey_small, xkey_big = jax.random.split(key, 3)
    params = init_actor_params(pkey, observation_space, action_space)

    # Small batch: exercises batch/action padding path, grid=(1,).
    x_small = jax.random.normal(xkey_small, (4, observation_space), jnp.float32)
    out_small = actor_forward(x_small, params)
    jax.block_until_ready(out_small)
    assert out_small.shape == (4, action_space)
    assert jnp.allclose(out_small, _reference_bf16(x_small, params), atol=5e-3), \
        "small-batch mismatch vs bf16-matmul JAX reference"
    assert jnp.allclose(out_small, _reference_f32(x_small, params), atol=5e-2), \
        "small-batch mismatch vs f32 JAX reference"

    # Larger batch: exercises grid=(2,) (balanced even grid for v7x megacore),
    # VMEM-resident weights across steps, and the parallel batch axis.
    x_big = jax.random.normal(xkey_big, (512, observation_space), jnp.float32)
    out_big = actor_forward(x_big, params)
    jax.block_until_ready(out_big)
    assert out_big.shape == (512, action_space)
    assert jnp.allclose(out_big, _reference_bf16(x_big, params), atol=5e-3), \
        "large-batch mismatch vs bf16-matmul JAX reference"
    assert jnp.allclose(out_big, _reference_f32(x_big, params), atol=5e-2), \
        "large-batch mismatch vs f32 JAX reference"

    print("KERNEL_OK")
</pallas_src>

<mosaic_0001>
module attributes {stable_mosaic.version = 11 : i64} {
  func.func @actor_kernel(%arg0: i32, %arg1: memref<16x16xf32, #tpu.memory_space<vmem>>, %arg2: memref<16x128xbf16, #tpu.memory_space<vmem>>, %arg3: memref<1x128xf32, #tpu.memory_space<vmem>>, %arg4: memref<128x128xbf16, #tpu.memory_space<vmem>>, %arg5: memref<1x128xf32, #tpu.memory_space<vmem>>, %arg6: memref<128x256xbf16, #tpu.memory_space<vmem>>, %arg7: memref<1x256xf32, #tpu.memory_space<vmem>>, %arg8: memref<256x128xbf16, #tpu.memory_space<vmem>>, %arg9: memref<1x128xf32, #tpu.memory_space<vmem>>, %arg10: memref<16x128xf32, #tpu.memory_space<vmem>>) attributes {dimension_semantics = [#tpu.dimension_semantics<parallel>], iteration_bounds = array<i64: 1>, scalar_prefetch = 0 : i64, scratch_operands = 0 : i64, tpu.core_type = #tpu.core_type<tc>, window_params = [{transform_indices = @transform_0, window_bounds = array<i64: 16, 16>}, {pipeline_mode = #tpu.pipeline_mode<synchronous>, transform_indices = @transform_1, window_bounds = array<i64: 16, 128>}, {pipeline_mode = #tpu.pipeline_mode<synchronous>, transform_indices = @transform_2, window_bounds = array<i64: 1, 128>}, {pipeline_mode = #tpu.pipeline_mode<synchronous>, transform_indices = @transform_3, window_bounds = array<i64: 128, 128>}, {pipeline_mode = #tpu.pipeline_mode<synchronous>, transform_indices = @transform_4, window_bounds = array<i64: 1, 128>}, {pipeline_mode = #tpu.pipeline_mode<synchronous>, transform_indices = @transform_5, window_bounds = array<i64: 128, 256>}, {pipeline_mode = #tpu.pipeline_mode<synchronous>, transform_indices = @transform_6, window_bounds = array<i64: 1, 256>}, {pipeline_mode = #tpu.pipeline_mode<synchronous>, transform_indices = @transform_7, window_bounds = array<i64: 256, 128>}, {pipeline_mode = #tpu.pipeline_mode<synchronous>, transform_indices = @transform_8, window_bounds = array<i64: 1, 128>}, {transform_indices = @transform_9, window_bounds = array<i64: 16, 128>}]} {
    %c0 = arith.constant 0 : index
    %c0_0 = arith.constant 0 : index
    %0 = vector.load %arg1[%c0, %c0_0] : memref<16x16xf32, #tpu.memory_space<vmem>>, vector<16x16xf32>
    %1 = arith.truncf %0 : vector<16x16xf32> to vector<16x16xbf16>
    %c0_1 = arith.constant 0 : index
    %c0_2 = arith.constant 0 : index
    %2 = vector.load %arg2[%c0_1, %c0_2] : memref<16x128xbf16, #tpu.memory_space<vmem>>, vector<16x128xbf16>
    %cst = arith.constant dense<0.000000e+00> : vector<16x128xf32>
    %3 = tpu.matmul %1, %2, %cst {dimension_numbers = #tpu.dot_dimension_numbers<[1], [0], [0], [1], [0, 0, 1, 1], [], []>} : vector<16x16xbf16>, vector<16x128xbf16>, vector<16x128xf32> -> vector<16x128xf32>
    %c0_3 = arith.constant 0 : index
    %c0_4 = arith.constant 0 : index
    %4 = vector.load %arg3[%c0_3, %c0_4] : memref<1x128xf32, #tpu.memory_space<vmem>>, vector<1x128xf32>
    %5 = vector.broadcast %4 : vector<1x128xf32> to vector<16x128xf32>
    %6 = arith.addf %3, %5 : vector<16x128xf32>
    %cst_5 = arith.constant 0.000000e+00 : f32
    %7 = vector.broadcast %cst_5 : f32 to vector<16x128xf32>
    %8 = arith.maximumf %6, %7 : vector<16x128xf32>
    %9 = arith.truncf %8 : vector<16x128xf32> to vector<16x128xbf16>
    %c0_6 = arith.constant 0 : index
    %c0_7 = arith.constant 0 : index
    %10 = vector.load %arg4[%c0_6, %c0_7] : memref<128x128xbf16, #tpu.memory_space<vmem>>, vector<128x128xbf16>
    %cst_8 = arith.constant dense<0.000000e+00> : vector<16x128xf32>
    %11 = tpu.matmul %9, %10, %cst_8 {dimension_numbers = #tpu.dot_dimension_numbers<[1], [0], [0], [1], [0, 0, 1, 1], [], []>} : vector<16x128xbf16>, vector<128x128xbf16>, vector<16x128xf32> -> vector<16x128xf32>
    %c0_9 = arith.constant 0 : index
    %c0_10 = arith.constant 0 : index
    %12 = vector.load %arg5[%c0_9, %c0_10] : memref<1x128xf32, #tpu.memory_space<vmem>>, vector<1x128xf32>
    %13 = vector.broadcast %12 : vector<1x128xf32> to vector<16x128xf32>
    %14 = arith.addf %11, %13 : vector<16x128xf32>
    %cst_11 = arith.constant 0.000000e+00 : f32
    %15 = vector.broadcast %cst_11 : f32 to vector<16x128xf32>
    %16 = arith.maximumf %14, %15 : vector<16x128xf32>
    %17 = arith.truncf %16 : vector<16x128xf32> to vector<16x128xbf16>
    %c0_12 = arith.constant 0 : index
    %c0_13 = arith.constant 0 : index
    %18 = vector.load %arg6[%c0_12, %c0_13] : memref<128x256xbf16, #tpu.memory_space<vmem>>, vector<128x256xbf16>
    %cst_14 = arith.constant dense<0.000000e+00> : vector<16x256xf32>
    %19 = tpu.matmul %17, %18, %cst_14 {dimension_numbers = #tpu.dot_dimension_numbers<[1], [0], [0], [1], [0, 0, 1, 1], [], []>} : vector<16x128xbf16>, vector<128x256xbf16>, vector<16x256xf32> -> vector<16x256xf32>
    %c0_15 = arith.constant 0 : index
    %c0_16 = arith.constant 0 : index
    %20 = vector.load %arg7[%c0_15, %c0_16] : memref<1x256xf32, #tpu.memory_space<vmem>>, vector<1x256xf32>
    %21 = vector.broadcast %20 : vector<1x256xf32> to vector<16x256xf32>
    %22 = arith.addf %19, %21 : vector<16x256xf32>
    %cst_17 = arith.constant 0.000000e+00 : f32
    %23 = vector.broadcast %cst_17 : f32 to vector<16x256xf32>
    %24 = arith.maximumf %22, %23 : vector<16x256xf32>
    %25 = arith.truncf %24 : vector<16x256xf32> to vector<16x256xbf16>
    %c0_18 = arith.constant 0 : index
    %c0_19 = arith.constant 0 : index
    %26 = vector.load %arg8[%c0_18, %c0_19] : memref<256x128xbf16, #tpu.memory_space<vmem>>, vector<256x128xbf16>
    %cst_20 = arith.constant dense<0.000000e+00> : vector<16x128xf32>
    %27 = tpu.matmul %25, %26, %cst_20 {dimension_numbers = #tpu.dot_dimension_numbers<[1], [0], [0], [1], [0, 0, 1, 1], [], []>} : vector<16x256xbf16>, vector<256x128xbf16>, vector<16x128xf32> -> vector<16x128xf32>
    %c0_21 = arith.constant 0 : index
    %c0_22 = arith.constant 0 : index
    %28 = vector.load %arg9[%c0_21, %c0_22] : memref<1x128xf32, #tpu.memory_space<vmem>>, vector<1x128xf32>
    %29 = vector.broadcast %28 : vector<1x128xf32> to vector<16x128xf32>
    %30 = arith.addf %27, %29 : vector<16x128xf32>
    %31 = math.tanh %30 : vector<16x128xf32>
    %c0_23 = arith.constant 0 : index
    %c0_24 = arith.constant 0 : index
    %32 = vector.load %arg10[%c0_23, %c0_24] : memref<16x128xf32, #tpu.memory_space<vmem>>, vector<16x128xf32>
    tpu.vector_store %arg10[%c0_23, %c0_24], %31 {strides = array<i32>} : memref<16x128xf32, #tpu.memory_space<vmem>>, vector<16x128xf32>,
    return
  }
  func.func @transform_0(%arg0: i32) -> (i32, i32) {
    %c0_i32 = arith.constant 0 : i32
    %c0_i32_0 = arith.constant 0 : i32
    return %arg0, %c0_i32 : i32, i32
  }
  func.func @transform_1(%arg0: i32) -> (i32, i32) {
    %c0_i32 = arith.constant 0 : i32
    %c0_i32_0 = arith.constant 0 : i32
    %c0_i32_1 = arith.constant 0 : i32
    return %c0_i32, %c0_i32_0 : i32, i32
  }
  func.func @transform_2(%arg0: i32) -> (i32, i32) {
    %c0_i32 = arith.constant 0 : i32
    %c0_i32_0 = arith.constant 0 : i32
    %c0_i32_1 = arith.constant 0 : i32
    return %c0_i32, %c0_i32_0 : i32, i32
  }
  func.func @transform_3(%arg0: i32) -> (i32, i32) {
    %c0_i32 = arith.constant 0 : i32
    %c0_i32_0 = arith.constant 0 : i32
    %c0_i32_1 = arith.constant 0 : i32
    return %c0_i32, %c0_i32_0 : i32, i32
  }
  func.func @transform_4(%arg0: i32) -> (i32, i32) {
    %c0_i32 = arith.constant 0 : i32
    %c0_i32_0 = arith.constant 0 : i32
    %c0_i32_1 = arith.constant 0 : i32
    return %c0_i32, %c0_i32_0 : i32, i32
  }
  func.func @transform_5(%arg0: i32) -> (i32, i32) {
    %c0_i32 = arith.constant 0 : i32
    %c0_i32_0 = arith.constant 0 : i32
    %c0_i32_1 = arith.constant 0 : i32
    return %c0_i32, %c0_i32_0 : i32, i32
  }
  func.func @transform_6(%arg0: i32) -> (i32, i32) {
    %c0_i32 = arith.constant 0 : i32
    %c0_i32_0 = arith.constant 0 : i32
    %c0_i32_1 = arith.constant 0 : i32
    return %c0_i32, %c0_i32_0 : i32, i32
  }
  func.func @transform_7(%arg0: i32) -> (i32, i32) {
    %c0_i32 = arith.constant 0 : i32
    %c0_i32_0 = arith.constant 0 : i32
    %c0_i32_1 = arith.constant 0 : i32
    return %c0_i32, %c0_i32_0 : i32, i32
  }
  func.func @transform_8(%arg0: i32) -> (i32, i32) {
    %c0_i32 = arith.constant 0 : i32
    %c0_i32_0 = arith.constant 0 : i32
    %c0_i32_1 = arith.constant 0 : i32
    return %c0_i32, %c0_i32_0 : i32, i32
  }
  func.func @transform_9(%arg0: i32) -> (i32, i32) {
    %c0_i32 = arith.constant 0 : i32
    %c0_i32_0 = arith.constant 0 : i32
    return %arg0, %c0_i32 : i32, i32
  }
}

</mosaic_0001>

<llo_original>
// kernel: tpu_custom_call.1
$region0: #{tpu_custom_call.1}
  #allocation0 [shape = 'u32[]', space=smem, size = 0x4, offset = 0x4, fixed_abs, tag = 'smem constant byte address 0x4 - core index']
  #allocation1 [shape = 'u32[144,128]{1,0:T(1,128)}', space=vmem, size = 0x12000, scoped, tag = 'internal scratch']
  %s0 = inlined_call_operand.hbm [shape: f32[16,16], index: 0, kind: input, shape index: {}]
  %s1 = inlined_call_operand.hbm [shape: bf16[16,128], index: 1, kind: input, shape index: {}]
  %s2 = inlined_call_operand.vmem [shape: f32[1,128], index: 2, kind: input, shape index: {}]
  %s3 = inlined_call_operand.hbm [shape: bf16[128,128], index: 3, kind: input, shape index: {}]
  %s4 = inlined_call_operand.vmem [shape: f32[1,128], index: 4, kind: input, shape index: {}]
  %s5 = inlined_call_operand.hbm [shape: bf16[128,256], index: 5, kind: input, shape index: {}]
  %s6 = inlined_call_operand.vmem [shape: f32[1,256], index: 6, kind: input, shape index: {}]
  %s7 = inlined_call_operand.hbm [shape: bf16[256,128], index: 7, kind: input, shape index: {}]
  %s8 = inlined_call_operand.vmem [shape: f32[1,128], index: 8, kind: input, shape index: {}]
  %s9 = inlined_call_operand.hbm [shape: f32[16,128], index: 9, kind: output, shape index: {}]
  %s10 = sld [smem:[#allocation0]]
  $region66: #{tpu_custom_call.1} parent=0
    _
  %s12 = ssub.s32 1, %s10
  %s13 = scalar_select 0, %s12, %s10
  $region1: #{tpu_custom_call.1} parent=0
    #allocation2 [shape = 'u8[8192]{0}', space=vmem, size = 0x2000, scoped, tag = 'input window, operand 0, single buffered']
    #allocation3 [shape = 's32[1]{0}', space=sflag, size = 0x4, scoped, tag = 'scoped memory for tpu_custom_call.1']
    #allocation4 [shape = 's32[1]{0}', space=sflag, size = 0x4, scoped, tag = 'scoped memory for tpu_custom_call.1']
    #allocation5 [shape = 'u8[4096]{0}', space=vmem, size = 0x1000, scoped, tag = 'input window, operand 1, single buffered']
    #allocation6 [shape = 's32[1]{0}', space=sflag, size = 0x4, scoped, tag = 'scoped memory for tpu_custom_call.1']
    #allocation7 [shape = 'u8[32768]{0}', space=vmem, size = 0x8000, scoped, tag = 'input window, operand 3, single buffered']
    #allocation8 [shape = 'u8[65536]{0}', space=vmem, size = 0x10000, scoped, tag = 'input window, operand 5, single buffered']
    #allocation9 [shape = 's32[1]{0}', space=sflag, size = 0x4, scoped, tag = 'scoped memory for tpu_custom_call.1']
    #allocation10 [shape = 'u8[65536]{0}', space=vmem, size = 0x10000, scoped, tag = 'input window, operand 7, single buffered']
    #allocation11 [shape = 'u8[8192]{0}', space=vmem, size = 0x2000, scoped, tag = 'output window, operand 0, single buffered']
    %14 = vsyncpa [#allocation3], 0
    %15 = vsyncpa [#allocation6], 0
    %16 = vsyncpa [#allocation9], 0
    %17 = vsyncpa [#allocation4], 0
    // Predicated region
    $region2: #{tpu_custom_call.1} parent=1 // pred_check
      _
    $region3: #{tpu_custom_call.1} parent=1 // pred_check_branch
      %19 = sbr.rel (0) target = $region5
    $region4: #{tpu_custom_call.1} parent=1 // pred_region
      %s21 = ssub.s32 256, 256
      %22 = vsyncadd [#allocation3], %s21
      %s23 = sshll.u32 [#allocation2], 4
      %s24 = int_to_ptr.vmem [resolvable:$true] %s23
      %29 = dma.hbm_to_vmem [thread:$0]  %s0, 256, %s24, [#allocation3], 128, 128, 8
    $region5: #{tpu_custom_call.1} parent=1 // pred_fallthru
      _
    // Predicated region
    $region6: #{tpu_custom_call.1} parent=1 // pred_check
      _
    $region7: #{tpu_custom_call.1} parent=1 // pred_check_branch
      %31 = sbr.rel (0) target = $region9
    $region8: #{tpu_custom_call.1} parent=1 // pred_region
      %s33 = ssub.s32 128, 128
      %34 = vsyncadd [#allocation6], %s33
      %s35 = sshll.u32 [#allocation5], 4
      %s36 = int_to_ptr.vmem [resolvable:$true] %s35
      %41 = dma.hbm_to_vmem [thread:$0]  %s1, 128, %s36, [#allocation6], 64, 64, 4
    $region9: #{tpu_custom_call.1} parent=1 // pred_fallthru
      _
    // Predicated region
    $region10: #{tpu_custom_call.1} parent=1 // pred_check
      _
    $region11: #{tpu_custom_call.1} parent=1 // pred_check_branch
      %43 = sbr.rel (0) target = $region13
    $region12: #{tpu_custom_call.1} parent=1 // pred_region
      _
    $region13: #{tpu_custom_call.1} parent=1 // pred_fallthru
      _
    // Predicated region
    $region14: #{tpu_custom_call.1} parent=1 // pred_check
      _
    $region15: #{tpu_custom_call.1} parent=1 // pred_check_branch
      %45 = sbr.rel (0) target = $region17
    $region16: #{tpu_custom_call.1} parent=1 // pred_region
      %s47 = ssub.s32 1024, 1024
      %48 = vsyncadd [#allocation6], %s47
      %s49 = sshll.u32 [#allocation7], 4
      %s50 = int_to_ptr.vmem [resolvable:$true] %s49
      %55 = dma.hbm_to_vmem [thread:$0]  %s3, 1024, %s50, [#allocation6], 64, 64, 4
    $region17: #{tpu_custom_call.1} parent=1 // pred_fallthru
      _
    // Predicated region
    $region18: #{tpu_custom_call.1} parent=1 // pred_check
      _
    $region19: #{tpu_custom_call.1} parent=1 // pred_check_branch
      %57 = sbr.rel (0) target = $region21
    $region20: #{tpu_custom_call.1} parent=1 // pred_region
      _
    $region21: #{tpu_custom_call.1} parent=1 // pred_fallthru
      _
    // Predicated region
    $region22: #{tpu_custom_call.1} parent=1 // pred_check
      _
    $region23: #{tpu_custom_call.1} parent=1 // pred_check_branch
      %59 = sbr.rel (0) target = $region25
    $region24: #{tpu_custom_call.1} parent=1 // pred_region
      %s61 = ssub.s32 2048, 2048
      %62 = vsyncadd [#allocation9], %s61
      %s63 = sshll.u32 [#allocation8], 4
      %s64 = int_to_ptr.vmem [resolvable:$true] %s63
      %69 = dma.hbm_to_vmem [thread:$0]  %s5, 2048, %s64, [#allocation9], 128, 128, 8
    $region25: #{tpu_custom_call.1} parent=1 // pred_fallthru
      _
    // Predicated region
    $region26: #{tpu_custom_call.1} parent=1 // pred_check
      _
    $region27: #{tpu_custom_call.1} parent=1 // pred_check_branch
      %71 = sbr.rel (0) target = $region29
    $region28: #{tpu_custom_call.1} parent=1 // pred_region
      _
    $region29: #{tpu_custom_call.1} parent=1 // pred_fallthru
      _
    // Predicated region
    $region30: #{tpu_custom_call.1} parent=1 // pred_check
      _
    $region31: #{tpu_custom_call.1} parent=1 // pred_check_branch
      %73 = sbr.rel (0) target = $region33
    $region32: #{tpu_custom_call.1} parent=1 // pred_region
      %s75 = ssub.s32 2048, 2048
      %76 = vsyncadd [#allocation9], %s75
      %s77 = sshll.u32 [#allocation10], 4
      %s78 = int_to_ptr.vmem [resolvable:$true] %s77
      %83 = dma.hbm_to_vmem [thread:$0]  %s7, 2048, %s78, [#allocation9], 64, 64, 4
    $region33: #{tpu_custom_call.1} parent=1 // pred_fallthru
      _
    // Predicated region
    $region34: #{tpu_custom_call.1} parent=1 // pred_check
      _
    $region35: #{tpu_custom_call.1} parent=1 // pred_check_branch
      %85 = sbr.rel (0) target = $region37
    $region36: #{tpu_custom_call.1} parent=1 // pred_region
      _
    $region37: #{tpu_custom_call.1} parent=1 // pred_fallthru
      _
    // Predicated region
    $region38: #{tpu_custom_call.1} parent=1 // pred_check
      _
    $region39: #{tpu_custom_call.1} parent=1 // pred_check_branch
      %87 = sbr.rel (0) target = $region41
    $region40: #{tpu_custom_call.1} parent=1 // pred_region
      %88 = dma.done [#allocation3], 256
    $region41: #{tpu_custom_call.1} parent=1 // pred_fallthru
      _
    // Predicated region
    $region42: #{tpu_custom_call.1} parent=1 // pred_check
      _
    $region43: #{tpu_custom_call.1} parent=1 // pred_check_branch
      %90 = sbr.rel (0) target = $region45
    $region44: #{tpu_custom_call.1} parent=1 // pred_region
      %91 = dma.done [#allocation6], 128
    $region45: #{tpu_custom_call.1} parent=1 // pred_fallthru
      _
    // Predicated region
    $region46: #{tpu_custom_call.1} parent=1 // pred_check
      _
    $region47: #{tpu_custom_call.1} parent=1 // pred_check_branch
      %93 = sbr.rel (0) target = $region49
    $region48: #{tpu_custom_call.1} parent=1 // pred_region
      %94 = dma.done [#allocation6], 1024
    $region49: #{tpu_custom_call.1} parent=1 // pred_fallthru
      _
    // Predicated region
    $region50: #{tpu_custom_call.1} parent=1 // pred_check
      _
    $region51: #{tpu_custom_call.1} parent=1 // pred_check_branch
      %96 = sbr.rel (0) target = $region53
    $region52: #{tpu_custom_call.1} parent=1 // pred_region
      %97 = dma.done [#allocation9], 2048
    $region53: #{tpu_custom_call.1} parent=1 // pred_fallthru
      _
    // Predicated region
    $region54: #{tpu_custom_call.1} parent=1 // pred_check
      _
    $region55: #{tpu_custom_call.1} parent=1 // pred_check_branch
      %99 = sbr.rel (0) target = $region57
    $region56: #{tpu_custom_call.1} parent=1 // pred_region
      %100 = dma.done [#allocation9], 2048
    $region57: #{tpu_custom_call.1} parent=1 // pred_fallthru
      _
    %v102 = vld [vmem:[#allocation2] sm:$0xff]
    %v103 = vld [vmem:[#allocation2 + $0x8] sm:$0xff]
    %v104 = vpack.c.bf16 %v103, %v102
    %v105 = vld [vmem:[#allocation5] sm:$0xf]
    %v106 = vld [vmem:[#allocation5 + $0x4] sm:$0xf]
    %v107 = vld [vmem:[%s2] sm:$0x1]
    %v109 = vlaneseq
    %v110 = vshrl.u32 %v109, 7
    %v111 = vsub.s32 0, %v110
    %v112 = vrot.slane %v107, %v111
    %v116 = vunpack.c.l.b16 %v105
    %v117 = vunpack.c.l.b16 %v106
    %v118 = vpack.c.b16 %v117, %v116
    %vm120 = vcmask 130048
    %v122 = vsel %vm120, %v104, 0
    %124 = vmatprep.subr.bf16.mxu0 0
    %125 = vmatpush1.bf16.msra.mxu0 0
    %126 = vmatprep.subr.bf16.mxu0 0
    %127 = vmatpush1.bf16.msra.mxu0 0
    %128 = vmatprep.subr.bf16.mxu0 0
    %129 = vmatpush1.bf16.msra.mxu0 0
    %130 = vmatprep.subr.bf16.mxu0 0
    %131 = vmatpush1.bf16.msra.mxu0 0
    %132 = vmatprep.subr.bf16.mxu0 0
    %133 = vmatpush1.bf16.msra.mxu0 0
    %134 = vmatprep.subr.bf16.mxu0 0
    %135 = vmatpush1.bf16.msra.mxu0 0
    %136 = vmatprep.subr.bf16.mxu0 0
    %137 = vmatpush1.bf16.msra.mxu0 0
    %138 = vmatprep.subr.bf16.mxu0 0
    %139 = vmatpush1.bf16.msra.mxu0 %v118
    %140 = vmatprep.subr.bf16.mxu0 0
    %141 = vmatpush2.bf16.msra.mxu0 0
    %142 = vmatprep.subr.bf16.mxu0 0
    %143 = vmatpush2.bf16.msra.mxu0 0
    %144 = vmatprep.subr.bf16.mxu0 0
    %145 = vmatpush2.bf16.msra.mxu0 0
    %146 = vmatprep.subr.bf16.mxu0 0
    %147 = vmatpush2.bf16.msra.mxu0 0
    %148 = vmatprep.subr.bf16.mxu0 0
    %149 = vmatpush2.bf16.msra.mxu0 0
    %150 = vmatprep.subr.bf16.mxu0 0
    %151 = vmatpush2.bf16.msra.mxu0 0
    %152 = vmatprep.subr.bf16.mxu0 0
    %153 = vmatpush2.bf16.msra.mxu0 0
    %154 = vmatprep.subr.bf16.mxu0 0
    %155 = vmatpush2.bf16.msra.mxu0 0
    %156 = vmatprep.mubr.bf16.mxu0 0
    %157 = vmatmul.mubr.bf16.gmra.mxu0 %v122
    %v158 = vpop.f32.mrf.mxu0
    %v159 = vadd.f32 %v112, %v158
    %v160 = vpop.f32.mrf.mxu0
    %v161 = vpop.f32.mrf.mxu0
    %v162 = vadd.f32 %v112, %v161
    %v163 = vpop.f32.mrf.mxu0
    %164 = vdwg.mxu0
    %v165 = vmax.f32 %v159, 0.0
    %v166 = vmax.f32 %v162, 0.0
    %v167 = vpack.c.bf16 %v166, %v165
    %v168 = vld [vmem:[#allocation7] sm:$0xf]
    %v169 = vld [vmem:[#allocation7 + $0x4] sm:$0xf]
    %v170 = vld [vmem:[#allocation7 + $0x8] sm:$0xf]
    %v171 = vld [vmem:[#allocation7 + $0xc] sm:$0xf]
    %v172 = vld [vmem:[#allocation7 + $0x10] sm:$0xf]
    %v173 = vld [vmem:[#allocation7 + $0x14] sm:$0xf]
    %v174 = vld [vmem:[#allocation7 + $0x18] sm:$0xf]
    %v175 = vld [vmem:[#allocation7 + $0x1c] sm:$0xf]
    %v176 = vld [vmem:[#allocation7 + $0x20] sm:$0xf]
    %v177 = vld [vmem:[#allocation7 + $0x24] sm:$0xf]
    %v178 = vld [vmem:[#allocation7 + $0x28] sm:$0xf]
    %v179 = vld [vmem:[#allocation7 + $0x2c] sm:$0xf]
    %v180 = vld [vmem:[#allocation7 + $0x30] sm:$0xf]
    %v181 = vld [vmem:[#allocation7 + $0x34] sm:$0xf]
    %v182 = vld [vmem:[#allocation7 + $0x38] sm:$0xf]
    %v183 = vld [vmem:[#allocation7 + $0x3c] sm:$0xf]
    %v184 = vld [vmem:[%s4] sm:$0x1]
    %v186 = vlaneseq
    %v187 = vshrl.u32 %v186, 7
    %v188 = vsub.s32 0, %v187
    %v189 = vrot.slane %v184, %v188
    %v207 = vunpack.c.l.b16 %v168
    %v208 = vunpack.c.l.b16 %v169
    %v209 = vunpack.c.l.b16 %v170
    %v210 = vunpack.c.l.b16 %v171
    %v211 = vunpack.c.l.b16 %v172
    %v212 = vunpack.c.l.b16 %v173
    %v213 = vunpack.c.l.b16 %v174
    %v214 = vunpack.c.l.b16 %v175
    %v215 = vunpack.c.l.b16 %v176
    %v216 = vunpack.c.l.b16 %v177
    %v217 = vunpack.c.l.b16 %v178
    %v218 = vunpack.c.l.b16 %v179
    %v219 = vunpack.c.l.b16 %v180
    %v220 = vunpack.c.l.b16 %v181
    %v221 = vunpack.c.l.b16 %v182
    %v222 = vunpack.c.l.b16 %v183
    %v223 = vpack.c.b16 %v208, %v207
    %v224 = vpack.c.b16 %v210, %v209
    %v225 = vpack.c.b16 %v212, %v211
    %v226 = vpack.c.b16 %v214, %v213
    %v227 = vpack.c.b16 %v216, %v215
    %v228 = vpack.c.b16 %v218, %v217
    %v229 = vpack.c.b16 %v220, %v219
    %v230 = vpack.c.b16 %v222, %v221
    %239 = vmatprep.subr.bf16.mxu0 0
    %240 = vmatpush1.bf16.msra.mxu0 %v230
    %241 = vmatprep.subr.bf16.mxu0 0
    %242 = vmatpush1.bf16.msra.mxu0 %v229
    %243 = vmatprep.subr.bf16.mxu0 0
    %244 = vmatpush1.bf16.msra.mxu0 %v228
    %245 = vmatprep.subr.bf16.mxu0 0
    %246 = vmatpush1.bf16.msra.mxu0 %v227
    %247 = vmatprep.subr.bf16.mxu0 0
    %248 = vmatpush1.bf16.msra.mxu0 %v226
    %249 = vmatprep.subr.bf16.mxu0 0
    %250 = vmatpush1.bf16.msra.mxu0 %v225
    %251 = vmatprep.subr.bf16.mxu0 0
    %252 = vmatpush1.bf16.msra.mxu0 %v224
    %253 = vmatprep.subr.bf16.mxu0 0
    %254 = vmatpush1.bf16.msra.mxu0 %v223
    %255 = vmatprep.subr.bf16.mxu0 0
    %256 = vmatpush2.bf16.msra.mxu0 0
    %257 = vmatprep.subr.bf16.mxu0 0
    %258 = vmatpush2.bf16.msra.mxu0 0
    %259 = vmatprep.subr.bf16.mxu0 0
    %260 = vmatpush2.bf16.msra.mxu0 0
    %261 = vmatprep.subr.bf16.mxu0 0
    %262 = vmatpush2.bf16.msra.mxu0 0
    %263 = vmatprep.subr.bf16.mxu0 0
    %264 = vmatpush2.bf16.msra.mxu0 0
    %265 = vmatprep.subr.bf16.mxu0 0
    %266 = vmatpush2.bf16.msra.mxu0 0
    %267 = vmatprep.subr.bf16.mxu0 0
    %268 = vmatpush2.bf16.msra.mxu0 0
    %269 = vmatprep.subr.bf16.mxu0 0
    %270 = vmatpush2.bf16.msra.mxu0 0
    %271 = vmatprep.mubr.bf16.mxu0 0
    %272 = vmatmul.mubr.bf16.gmra.mxu0 %v167
    %v273 = vpop.f32.mrf.mxu0
    %v274 = vadd.f32 %v189, %v273
    %v275 = vpop.f32.mrf.mxu0
    %v276 = vpop.f32.mrf.mxu0
    %v277 = vadd.f32 %v189, %v276
    %v278 = vpop.f32.mrf.mxu0
    %279 = vdwg.mxu0
    %v280 = vmax.f32 %v274, 0.0
    %v281 = vmax.f32 %v277, 0.0
    %v282 = vpack.c.bf16 %v281, %v280
    %v283 = vld [vmem:[#allocation8] sm:$0xff]
    %v284 = vld [vmem:[#allocation8 + $0x8] sm:$0xff]
    %v285 = vld [vmem:[#allocation8 + $0x10] sm:$0xff]
    %v286 = vld [vmem:[#allocation8 + $0x18] sm:$0xff]
    %v287 = vld [vmem:[#allocation8 + $0x20] sm:$0xff]
    %v288 = vld [vmem:[#allocation8 + $0x28] sm:$0xff]
    %v289 = vld [vmem:[#allocation8 + $0x30] sm:$0xff]
    %v290 = vld [vmem:[#allocation8 + $0x38] sm:$0xff]
    %v291 = vld [vmem:[#allocation8 + $0x40] sm:$0xff]
    %v292 = vld [vmem:[#allocation8 + $0x48] sm:$0xff]
    %v293 = vld [vmem:[#allocation8 + $0x50] sm:$0xff]
    %v294 = vld [vmem:[#allocation8 + $0x58] sm:$0xff]
    %v295 = vld [vmem:[#allocation8 + $0x60] sm:$0xff]
    %v296 = vld [vmem:[#allocation8 + $0x68] sm:$0xff]
    %v297 = vld [vmem:[#allocation8 + $0x70] sm:$0xff]
    %v298 = vld [vmem:[#allocation8 + $0x78] sm:$0xff]
    %v299 = vld [vmem:[%s6] sm:$0x3]
    %v301 = vlaneseq
    %v302 = vshrl.u32 %v301, 7
    %v303 = vsub.s32 0, %v302
    %v304 = vrot.slane %v299, %v303
    %v305 = vlaneseq
    %v306 = vshrl.u32 %v305, 7
    %v307 = vsub.s32 1, %v306
    %v308 = vrot.slane %v299, %v307
    %v327 = vunpack.c.l.b16 %v283
    %v328 = vunpack.c.h.b16 %v283
    %v329 = vunpack.c.l.b16 %v284
    %v330 = vunpack.c.h.b16 %v284
    %v331 = vunpack.c.l.b16 %v285
    %v332 = vunpack.c.h.b16 %v285
    %v333 = vunpack.c.l.b16 %v286
    %v334 = vunpack.c.h.b16 %v286
    %v335 = vunpack.c.l.b16 %v287
    %v336 = vunpack.c.h.b16 %v287
    %v337 = vunpack.c.l.b16 %v288
    %v338 = vunpack.c.h.b16 %v288
    %v339 = vunpack.c.l.b16 %v289
    %v340 = vunpack.c.h.b16 %v289
    %v341 = vunpack.c.l.b16 %v290
    %v342 = vunpack.c.h.b16 %v290
    %v343 = vunpack.c.l.b16 %v291
    %v344 = vunpack.c.h.b16 %v291
    %v345 = vunpack.c.l.b16 %v292
    %v346 = vunpack.c.h.b16 %v292
    %v347 = vunpack.c.l.b16 %v293
    %v348 = vunpack.c.h.b16 %v293
    %v349 = vunpack.c.l.b16 %v294
    %v350 = vunpack.c.h.b16 %v294
    %v351 = vunpack.c.l.b16 %v295
    %v352 = vunpack.c.h.b16 %v295
    %v353 = vunpack.c.l.b16 %v296
    %v354 = vunpack.c.h.b16 %v296
    %v355 = vunpack.c.l.b16 %v297
    %v356 = vunpack.c.h.b16 %v297
    %v357 = vunpack.c.l.b16 %v298
    %v358 = vunpack.c.h.b16 %v298
    %v359 = vpack.c.b16 %v329, %v327
    %v360 = vpack.c.b16 %v330, %v328
    %v361 = vpack.c.b16 %v333, %v331
    %v362 = vpack.c.b16 %v334, %v332
    %v363 = vpack.c.b16 %v337, %v335
    %v364 = vpack.c.b16 %v338, %v336
    %v365 = vpack.c.b16 %v341, %v339
    %v366 = vpack.c.b16 %v342, %v340
    %v367 = vpack.c.b16 %v345, %v343
    %v368 = vpack.c.b16 %v346, %v344
    %v369 = vpack.c.b16 %v349, %v347
    %v370 = vpack.c.b16 %v350, %v348
    %v371 = vpack.c.b16 %v353, %v351
    %v372 = vpack.c.b16 %v354, %v352
    %v373 = vpack.c.b16 %v357, %v355
    %v374 = vpack.c.b16 %v358, %v356
    %391 = vmatprep.subr.bf16.mxu0 %v374
    %392 = vmatpush1.bf16.msra.mxu0 %v373
    %393 = vmatprep.subr.bf16.mxu0 %v372
    %394 = vmatpush1.bf16.msra.mxu0 %v371
    %395 = vmatprep.subr.bf16.mxu0 %v370
    %396 = vmatpush1.bf16.msra.mxu0 %v369
    %397 = vmatprep.subr.bf16.mxu0 %v368
    %398 = vmatpush1.bf16.msra.mxu0 %v367
    %399 = vmatprep.subr.bf16.mxu0 %v366
    %400 = vmatpush1.bf16.msra.mxu0 %v365
    %401 = vmatprep.subr.bf16.mxu0 %v364
    %402 = vmatpush1.bf16.msra.mxu0 %v363
    %403 = vmatprep.subr.bf16.mxu0 %v362
    %404 = vmatpush1.bf16.msra.mxu0 %v361
    %405 = vmatprep.subr.bf16.mxu0 %v360
    %406 = vmatpush1.bf16.msra.mxu0 %v359
    %407 = vmatprep.subr.bf16.mxu0 0
    %408 = vmatpush2.bf16.msra.mxu0 0
    %409 = vmatprep.subr.bf16.mxu0 0
    %410 = vmatpush2.bf16.msra.mxu0 0
    %411 = vmatprep.subr.bf16.mxu0 0
    %412 = vmatpush2.bf16.msra.mxu0 0
    %413 = vmatprep.subr.bf16.mxu0 0
    %414 = vmatpush2.bf16.msra.mxu0 0
    %415 = vmatprep.subr.bf16.mxu0 0
    %416 = vmatpush2.bf16.msra.mxu0 0
    %417 = vmatprep.subr.bf16.mxu0 0
    %418 = vmatpush2.bf16.msra.mxu0 0
    %419 = vmatprep.subr.bf16.mxu0 0
    %420 = vmatpush2.bf16.msra.mxu0 0
    %421 = vmatprep.subr.bf16.mxu0 0
    %422 = vmatpush2.bf16.msra.mxu0 0
    %423 = vmatprep.mubr.bf16.mxu0 0
    %424 = vmatmul.mubr.bf16.gmra.mxu0 %v282
    %v425 = vpop.f32.mrf.mxu0
    %v426 = vadd.f32 %v304, %v425
    %v427 = vpop.f32.mrf.mxu0
    %v428 = vadd.f32 %v308, %v427
    %v429 = vpop.f32.mrf.mxu0
    %v430 = vadd.f32 %v304, %v429
    %v431 = vpop.f32.mrf.mxu0
    %v432 = vadd.f32 %v308, %v431
    %433 = vdwg.mxu0
    %v434 = vmax.f32 %v426, 0.0
    %v435 = vmax.f32 %v428, 0.0
    %v436 = vmax.f32 %v430, 0.0
    %v437 = vmax.f32 %v432, 0.0
    %v438 = vpack.c.bf16 %v436, %v434
    %v439 = vpack.c.bf16 %v437, %v435
    %v440 = vld [vmem:[#allocation10] sm:$0xf]
    %v441 = vld [vmem:[#allocation10 + $0x4] sm:$0xf]
    %v442 = vld [vmem:[#allocation10 + $0x8] sm:$0xf]
    %v443 = vld [vmem:[#allocation10 + $0xc] sm:$0xf]
    %v444 = vld [vmem:[#allocation10 + $0x10] sm:$0xf]
    %v445 = vld [vmem:[#allocation10 + $0x14] sm:$0xf]
    %v446 = vld [vmem:[#allocation10 + $0x18] sm:$0xf]
    %v447 = vld [vmem:[#allocation10 + $0x1c] sm:$0xf]
    %v448 = vld [vmem:[#allocation10 + $0x20] sm:$0xf]
    %v449 = vld [vmem:[#allocation10 + $0x24] sm:$0xf]
    %v450 = vld [vmem:[#allocation10 + $0x28] sm:$0xf]
    %v451 = vld [vmem:[#allocation10 + $0x2c] sm:$0xf]
    %v452 = vld [vmem:[#allocation10 + $0x30] sm:$0xf]
    %v453 = vld [vmem:[#allocation10 + $0x34] sm:$0xf]
    %v454 = vld [vmem:[#allocation10 + $0x38] sm:$0xf]
    %v455 = vld [vmem:[#allocation10 + $0x3c] sm:$0xf]
    %v456 = vld [vmem:[#allocation10 + $0x40] sm:$0xf]
    %v457 = vld [vmem:[#allocation10 + $0x44] sm:$0xf]
    %v458 = vld [vmem:[#allocation10 + $0x48] sm:$0xf]
    %v459 = vld [vmem:[#allocation10 + $0x4c] sm:$0xf]
    %v460 = vld [vmem:[#allocation10 + $0x50] sm:$0xf]
    %v461 = vld [vmem:[#allocation10 + $0x54] sm:$0xf]
    %v462 = vld [vmem:[#allocation10 + $0x58] sm:$0xf]
    %v463 = vld [vmem:[#allocation10 + $0x5c] sm:$0xf]
    %v464 = vld [vmem:[#allocation10 + $0x60] sm:$0xf]
    %v465 = vld [vmem:[#allocation10 + $0x64] sm:$0xf]
    %v466 = vld [vmem:[#allocation10 + $0x68] sm:$0xf]
    %v467 = vld [vmem:[#allocation10 + $0x6c] sm:$0xf]
    %v468 = vld [vmem:[#allocation10 + $0x70] sm:$0xf]
    %v469 = vld [vmem:[#allocation10 + $0x74] sm:$0xf]
    %v470 = vld [vmem:[#allocation10 + $0x78] sm:$0xf]
    %v471 = vld [vmem:[#allocation10 + $0x7c] sm:$0xf]
    %v472 = vld [vmem:[%s8] sm:$0x1]
    %v474 = vlaneseq
    %v475 = vshrl.u32 %v474, 7
    %v476 = vsub.s32 0, %v475
    %v477 = vrot.slane %v472, %v476
    %v511 = vunpack.c.l.b16 %v440
    %v512 = vunpack.c.l.b16 %v441
    %v513 = vunpack.c.l.b16 %v442
    %v514 = vunpack.c.l.b16 %v443
    %v515 = vunpack.c.l.b16 %v444
    %v516 = vunpack.c.l.b16 %v445
    %v517 = vunpack.c.l.b16 %v446
    %v518 = vunpack.c.l.b16 %v447
    %v519 = vunpack.c.l.b16 %v448
    %v520 = vunpack.c.l.b16 %v449
    %v521 = vunpack.c.l.b16 %v450
    %v522 = vunpack.c.l.b16 %v451
    %v523 = vunpack.c.l.b16 %v452
    %v524 = vunpack.c.l.b16 %v453
    %v525 = vunpack.c.l.b16 %v454
    %v526 = vunpack.c.l.b16 %v455
    %v527 = vunpack.c.l.b16 %v456
    %v528 = vunpack.c.l.b16 %v457
    %v529 = vunpack.c.l.b16 %v458
    %v530 = vunpack.c.l.b16 %v459
    %v531 = vunpack.c.l.b16 %v460
    %v532 = vunpack.c.l.b16 %v461
    %v533 = vunpack.c.l.b16 %v462
    %v534 = vunpack.c.l.b16 %v463
    %v535 = vunpack.c.l.b16 %v464
    %v536 = vunpack.c.l.b16 %v465
    %v537 = vunpack.c.l.b16 %v466
    %v538 = vunpack.c.l.b16 %v467
    %v539 = vunpack.c.l.b16 %v468
    %v540 = vunpack.c.l.b16 %v469
    %v541 = vunpack.c.l.b16 %v470
    %v542 = vunpack.c.l.b16 %v471
    %v543 = vpack.c.b16 %v512, %v511
    %v544 = vpack.c.b16 %v514, %v513
    %v545 = vpack.c.b16 %v516, %v515
    %v546 = vpack.c.b16 %v518, %v517
    %v547 = vpack.c.b16 %v520, %v519
    %v548 = vpack.c.b16 %v522, %v521
    %v549 = vpack.c.b16 %v524, %v523
    %v550 = vpack.c.b16 %v526, %v525
    %v551 = vpack.c.b16 %v528, %v527
    %v552 = vpack.c.b16 %v530, %v529
    %v553 = vpack.c.b16 %v532, %v531
    %v554 = vpack.c.b16 %v534, %v533
    %v555 = vpack.c.b16 %v536, %v535
    %v556 = vpack.c.b16 %v538, %v537
    %v557 = vpack.c.b16 %v540, %v539
    %v558 = vpack.c.b16 %v542, %v541
    %575 = vmatprep.subr.bf16.mxu0 0
    %576 = vmatpush1.bf16.msra.mxu0 %v550
    %577 = vmatprep.subr.bf16.mxu0 0
    %578 = vmatpush1.bf16.msra.mxu0 %v549
    %579 = vmatprep.subr.bf16.mxu0 0
    %580 = vmatpush1.bf16.msra.mxu0 %v548
    %581 = vmatprep.subr.bf16.mxu0 0
    %582 = vmatpush1.bf16.msra.mxu0 %v547
    %583 = vmatprep.subr.bf16.mxu0 0
    %584 = vmatpush1.bf16.msra.mxu0 %v546
    %585 = vmatprep.subr.bf16.mxu0 0
    %586 = vmatpush1.bf16.msra.mxu0 %v545
    %587 = vmatprep.subr.bf16.mxu0 0
    %588 = vmatpush1.bf16.msra.mxu0 %v544
    %589 = vmatprep.subr.bf16.mxu0 0
    %590 = vmatpush1.bf16.msra.mxu0 %v543
    %591 = vmatprep.subr.bf16.mxu0 0
    %592 = vmatpush2.bf16.msra.mxu0 %v558
    %593 = vmatprep.subr.bf16.mxu0 0
    %594 = vmatpush2.bf16.msra.mxu0 %v557
    %595 = vmatprep.subr.bf16.mxu0 0
    %596 = vmatpush2.bf16.msra.mxu0 %v556
    %597 = vmatprep.subr.bf16.mxu0 0
    %598 = vmatpush2.bf16.msra.mxu0 %v555
    %599 = vmatprep.subr.bf16.mxu0 0
    %600 = vmatpush2.bf16.msra.mxu0 %v554
    %601 = vmatprep.subr.bf16.mxu0 0
    %602 = vmatpush2.bf16.msra.mxu0 %v553
    %603 = vmatprep.subr.bf16.mxu0 0
    %604 = vmatpush2.bf16.msra.mxu0 %v552
    %605 = vmatprep.subr.bf16.mxu0 0
    %606 = vmatpush2.bf16.msra.mxu0 %v551
    %607 = vmatprep.mubr.bf16.mxu0 %v439
    %608 = vmatmul.mubr.bf16.gmra.mxu0 %v438
    %v609 = vpop.f32.mrf.mxu0
    %v610 = vadd.f32 %v477, %v609
    %v611 = vpop.f32.mrf.mxu0
    %v612 = vpop.f32.mrf.mxu0
    %v613 = vadd.f32 %v477, %v612
    %v614 = vpop.f32.mrf.mxu0
    %615 = vdwg.mxu0
    %v616 = vtanh.pop %v610
    %v617 = vtanh.pop %v613
    %618 = vst [vmem:[#allocation11] sm:$0xff] %v616
    %619 = vst [vmem:[#allocation11 + $0x8] sm:$0xff] %v617
    // Predicated region
    $region58: #{tpu_custom_call.1} parent=1 // pred_check
      _
    $region59: #{tpu_custom_call.1} parent=1 // pred_check_branch
      %621 = sbr.rel (0) target = $region61
    $region60: #{tpu_custom_call.1} parent=1 // pred_region
      %s623 = ssub.s32 256, 256
      %624 = vsyncadd [#allocation4], %s623
      %s625 = sshll.u32 [#allocation11], 4
      %s626 = int_to_ptr.vmem [resolvable:$true] %s625
      %631 = dma.vmem_to_hbm [thread:$0]  %s626, 256, %s9, [#allocation4], 128, 128, 8
    $region61: #{tpu_custom_call.1} parent=1 // pred_fallthru
      _
    // Predicated region
    $region62: #{tpu_custom_call.1} parent=1 // pred_check
      _
    $region63: #{tpu_custom_call.1} parent=1 // pred_check_branch
      %633 = sbr.rel (0) target = $region65
    $region64: #{tpu_custom_call.1} parent=1 // pred_region
      %634 = dma.done [#allocation4], 256
    $region65: #{tpu_custom_call.1} parent=1 // pred_fallthru
      _
    %635 = vsyncpa [#allocation3], 1
    %636 = vsyncpa [#allocation6], 1
    %637 = vsyncpa [#allocation9], 1
    %638 = vsyncpa [#allocation4], 1

</llo_original>
